<compile_context>
chip_gen: v5e
topology: v5e:2x2
jax: 0.10.0
libtpu: 0.0.40
codegen_flags: <defaults>
</compile_context>

<pallas_src>
import jax
import jax.numpy as jnp
from jax.experimental import pallas as pl
from jax.experimental.pallas import tpu as pltpu


def _vq_kernel(x_ref, e_ref, et_ref, e2_ref, zq_ref, sse_ref):
    """One tile of columns (rows of the original flattened input).

    x_ref:   (D, TN)  encoder outputs, transposed (lane-dense over N)
    e_ref:   (K, D)   codebook (resident, pre-cast f32)
    et_ref:  (D, K)   codebook transposed (resident, pre-cast f32)
    e2_ref:  (K, 1)   precomputed |e_k|^2 (hoisted out of the per-tile body)
    zq_ref:  (D, TN)  quantized outputs, transposed
    sse_ref: (1, TN)  per-column sum over D of (z_q - z_e)^2 (partial SSE)
    """
    x_t = x_ref[...]                      # (D, TN) f32
    e = e_ref[...]                        # (K, D)  f32
    e_t = et_ref[...]                     # (D, K)  f32
    e2 = e2_ref[...]                      # (K, 1)  f32

    k = e.shape[0]
    tn = x_t.shape[1]

    # distance up to the per-column |x|^2 constant (argmin-invariant):
    # dist^T = |e|^2 - 2 * E @ x^T          -> (K, TN), MXU matmul
    ex = jnp.dot(e, x_t, preferred_element_type=jnp.float32)      # (K, TN)
    dist_t = e2 - 2.0 * ex                                        # (K, TN)

    # first-min argmin over the codebook axis (matches torch.argmin tie-break),
    # built from min-reductions + compares (no dynamic gather needed).
    min_d = jnp.min(dist_t, axis=0, keepdims=True)                # (1, TN)
    iota_k = jax.lax.broadcasted_iota(jnp.int32, (k, tn), 0)      # (K, TN)
    masked = jnp.where(dist_t == min_d, iota_k, jnp.int32(k))
    idx = jnp.min(masked, axis=0, keepdims=True)                  # (1, TN)
    onehot = (iota_k == idx).astype(jnp.float32)                  # (K, TN)

    # z_q^T = E^T @ onehot : full-K contraction, lane-dense (D, TN) result.
    zq_t = jnp.dot(e_t, onehot, preferred_element_type=jnp.float32)
    zq_ref[...] = zq_t.astype(zq_ref.dtype)

    # per-column partial squared error (reduced over D only); final sum in wrapper.
    diff = zq_t - x_t
    sse_ref[...] = jnp.sum(diff * diff, axis=0, keepdims=True)


def vector_quantizer_forward(z_e, embedding, commitment_cost=0.25, *, tile_n=1024):
    """Pallas implementation of VectorQuantizer.forward.

    z_e:       (B, C, H, W) float32, NCHW (PyTorch convention)
    embedding: (num_embeddings, embedding_dim) float32, embedding_dim == C
    returns:   (z_q (B, C, H, W), loss scalar)
    """
    B, C, H, W = z_e.shape
    K, D = embedding.shape
    assert D == C, "embedding_dim must equal channel dim"

    N = B * H * W
    tile_n = min(tile_n, N)
    # TODO(synk): pad N (and mask padded columns out of SSE) for shapes where
    # B*H*W is not divisible by tile_n.
    assert N % tile_n == 0, "N = B*H*W must be divisible by tile_n"
    ntiles = N // tile_n

    # NCHW is already channel-major: a cheap (C, B*H*W) slab, no NHWC permute.
    x_t = jnp.transpose(z_e, (1, 0, 2, 3)).reshape(C, N).astype(jnp.float32)

    e = embedding.astype(jnp.float32)                 # (K, D)
    e_t = e.T                                         # (D, K)
    e2 = jnp.sum(e * e, axis=1, keepdims=True)        # (K, 1), hoisted constant

    zq_t, sse_part = pl.pallas_call(
        _vq_kernel,
        out_shape=(
            jax.ShapeDtypeStruct((D, N), jnp.float32),
            jax.ShapeDtypeStruct((1, N), jnp.float32),
        ),
        grid=(ntiles,),
        in_specs=[
            pl.BlockSpec((D, tile_n), lambda i: (0, i)),   # x^T columns (tiled)
            pl.BlockSpec((K, D), lambda i: (0, 0)),        # codebook (resident)
            pl.BlockSpec((D, K), lambda i: (0, 0)),        # codebook^T (resident)
            pl.BlockSpec((K, 1), lambda i: (0, 0)),        # |e|^2 (resident)
        ],
        out_specs=(
            pl.BlockSpec((D, tile_n), lambda i: (0, i)),   # z_q^T columns (tiled)
            pl.BlockSpec((1, tile_n), lambda i: (0, i)),   # per-column partial SSE
        ),
        compiler_params=pltpu.CompilerParams(
            dimension_semantics=("parallel",),             # disjoint outputs -> parallel
        ),
    )(x_t, e, e_t, e2)

    mse = jnp.sum(sse_part) / jnp.float32(z_e.size)
    # codebook_loss + commitment_cost * commitment_loss; both equal mse in forward
    loss = (1.0 + commitment_cost) * mse

    # straight-through estimator: forward value of z_e + (z_q - z_e).detach() is z_q
    # TODO(synk): detach / custom_vjp semantics only matter for backward, not implemented.
    z_q = jnp.transpose(zq_t.reshape(C, B, H, W), (1, 0, 2, 3))
    return z_q, loss


def _reference(z_e, embedding, commitment_cost=0.25):
    B, C, H, W = z_e.shape
    x = jnp.transpose(z_e, (0, 2, 3, 1)).reshape(-1, C)
    d = (jnp.sum(x ** 2, axis=1, keepdims=True)
         + jnp.sum(embedding ** 2, axis=1)
         - 2.0 * x @ embedding.T)
    idx = jnp.argmin(d, axis=1)
    zq_flat = embedding[idx]
    zq = jnp.transpose(zq_flat.reshape(B, H, W, C), (0, 3, 1, 2))
    mse = jnp.mean((zq - z_e) ** 2)
    return zq, (1.0 + commitment_cost) * mse


if __name__ == "__main__":
    key = jax.random.PRNGKey(0)
    k_emb, k_x = jax.random.split(key)

    num_embeddings = 128
    embedding_dim = 8        # = C
    B, H, W = 2, 16, 16
    commitment_cost = 0.25

    # deterministic init, matching nn.Embedding.weight.data.uniform_(-1/K, 1/K)
    embedding = jax.random.uniform(
        k_emb, (num_embeddings, embedding_dim), dtype=jnp.float32,
        minval=-1.0 / num_embeddings, maxval=1.0 / num_embeddings)

    z_e = jax.random.normal(k_x, (B, embedding_dim, H, W), dtype=jnp.float32)

    z_q, loss = vector_quantizer_forward(z_e, embedding, commitment_cost)
    jax.block_until_ready((z_q, loss))

    z_q_ref, loss_ref = _reference(z_e, embedding, commitment_cost)
    assert z_q.shape == z_e.shape
    assert jnp.allclose(z_q, z_q_ref, atol=1e-5), "z_q mismatch"
    assert jnp.allclose(loss, loss_ref, rtol=1e-5, atol=1e-6), "loss mismatch"

    print("KERNEL_OK")
</pallas_src>

<mosaic_0001>
module attributes {stable_mosaic.version = 11 : i64} {
  func.func @_vq_kernel(%arg0: i32, %arg1: memref<8x512xf32, #tpu.memory_space<vmem>>, %arg2: memref<128x8xf32, #tpu.memory_space<vmem>>, %arg3: memref<8x128xf32, #tpu.memory_space<vmem>>, %arg4: memref<128x1xf32, #tpu.memory_space<vmem>>, %arg5: memref<8x512xf32, #tpu.memory_space<vmem>>, %arg6: memref<1x512xf32, #tpu.memory_space<vmem>>) attributes {dimension_semantics = [#tpu.dimension_semantics<parallel>], iteration_bounds = array<i64: 1>, scalar_prefetch = 0 : i64, scratch_operands = 0 : i64, tpu.core_type = #tpu.core_type<tc>, window_params = [{transform_indices = @transform_0, window_bounds = array<i64: 8, 512>}, {pipeline_mode = #tpu.pipeline_mode<synchronous>, transform_indices = @transform_1, window_bounds = array<i64: 128, 8>}, {pipeline_mode = #tpu.pipeline_mode<synchronous>, transform_indices = @transform_2, window_bounds = array<i64: 8, 128>}, {pipeline_mode = #tpu.pipeline_mode<synchronous>, transform_indices = @transform_3, window_bounds = array<i64: 128, 1>}, {transform_indices = @transform_4, window_bounds = array<i64: 8, 512>}, {transform_indices = @transform_5, window_bounds = array<i64: 1, 512>}]} {
    %c0 = arith.constant 0 : index
    %c0_0 = arith.constant 0 : index
    %0 = vector.load %arg1[%c0, %c0_0] : memref<8x512xf32, #tpu.memory_space<vmem>>, vector<8x512xf32>
    %c0_1 = arith.constant 0 : index
    %c0_2 = arith.constant 0 : index
    %1 = vector.load %arg2[%c0_1, %c0_2] : memref<128x8xf32, #tpu.memory_space<vmem>>, vector<128x8xf32>
    %c0_3 = arith.constant 0 : index
    %c0_4 = arith.constant 0 : index
    %2 = vector.load %arg3[%c0_3, %c0_4] : memref<8x128xf32, #tpu.memory_space<vmem>>, vector<8x128xf32>
    %c0_5 = arith.constant 0 : index
    %c0_6 = arith.constant 0 : index
    %3 = vector.load %arg4[%c0_5, %c0_6] : memref<128x1xf32, #tpu.memory_space<vmem>>, vector<128x1xf32>
    %cst = arith.constant dense<0.000000e+00> : vector<128x512xf32>
    %4 = tpu.matmul %1, %0, %cst {dimension_numbers = #tpu.dot_dimension_numbers<[1], [0], [0], [1], [0, 0, 1, 1], [], []>} : vector<128x8xf32>, vector<8x512xf32>, vector<128x512xf32> -> vector<128x512xf32>
    %cst_7 = arith.constant 2.000000e+00 : f32
    %5 = vector.broadcast %cst_7 : f32 to vector<128x512xf32>
    %6 = arith.mulf %5, %4 : vector<128x512xf32>
    %7 = vector.broadcast %3 : vector<128x1xf32> to vector<128x512xf32>
    %8 = arith.subf %7, %6 : vector<128x512xf32>
    %cst_8 = arith.constant dense<0x7F800000> : vector<512xf32>
    %9 = vector.multi_reduction <minimumf>, %8, %cst_8 [0] : vector<128x512xf32> to vector<512xf32>
    %10 = vector.shape_cast %9 : vector<512xf32> to vector<1x512xf32>
    %11 = tpu.iota {dimensions = array<i32: 0>} : vector<128x512xi32>
    %12 = vector.broadcast %10 : vector<1x512xf32> to vector<128x512xf32>
    %13 = arith.cmpf oeq, %8, %12 : vector<128x512xf32>
    %c128_i32 = arith.constant 128 : i32
    %14 = vector.broadcast %c128_i32 : i32 to vector<128x512xi32>
    %15 = arith.select %13, %11, %14 : vector<128x512xi1>, vector<128x512xi32>
    %cst_9 = arith.constant dense<2147483647> : vector<512xi32>
    %16 = vector.multi_reduction <minsi>, %15, %cst_9 [0] : vector<128x512xi32> to vector<512xi32>
    %17 = vector.shape_cast %16 : vector<512xi32> to vector<1x512xi32>
    %18 = vector.broadcast %17 : vector<1x512xi32> to vector<128x512xi32>
    %19 = arith.cmpi eq, %11, %18 : vector<128x512xi32>
    %20 = arith.extui %19 : vector<128x512xi1> to vector<128x512xi32>
    %21 = arith.sitofp %20 : vector<128x512xi32> to vector<128x512xf32>
    %cst_10 = arith.constant dense<0.000000e+00> : vector<8x512xf32>
    %22 = tpu.matmul %2, %21, %cst_10 {dimension_numbers = #tpu.dot_dimension_numbers<[1], [0], [0], [1], [0, 0, 1, 1], [], []>} : vector<8x128xf32>, vector<128x512xf32>, vector<8x512xf32> -> vector<8x512xf32>
    %c0_11 = arith.constant 0 : index
    %c0_12 = arith.constant 0 : index
    %23 = vector.load %arg5[%c0_11, %c0_12] : memref<8x512xf32, #tpu.memory_space<vmem>>, vector<8x512xf32>
    tpu.vector_store %arg5[%c0_11, %c0_12], %22 {strides = array<i32>} : memref<8x512xf32, #tpu.memory_space<vmem>>, vector<8x512xf32>,
    %24 = arith.subf %22, %0 : vector<8x512xf32>
    %25 = arith.mulf %24, %24 : vector<8x512xf32>
    %cst_13 = arith.constant dense<0.000000e+00> : vector<512xf32>
    %26 = vector.multi_reduction <add>, %25, %cst_13 [0] : vector<8x512xf32> to vector<512xf32>
    %27 = vector.shape_cast %26 : vector<512xf32> to vector<1x512xf32>
    %c0_14 = arith.constant 0 : index
    %c0_15 = arith.constant 0 : index
    %28 = vector.load %arg6[%c0_14, %c0_15] : memref<1x512xf32, #tpu.memory_space<vmem>>, vector<1x512xf32>
    tpu.vector_store %arg6[%c0_14, %c0_15], %27 {strides = array<i32>} : memref<1x512xf32, #tpu.memory_space<vmem>>, vector<1x512xf32>,
    return
  }
  func.func @transform_0(%arg0: i32) -> (i32, i32) {
    %c0_i32 = arith.constant 0 : i32
    %c0_i32_0 = arith.constant 0 : i32
    return %c0_i32, %arg0 : i32, i32
  }
  func.func @transform_1(%arg0: i32) -> (i32, i32) {
    %c0_i32 = arith.constant 0 : i32
    %c0_i32_0 = arith.constant 0 : i32
    %c0_i32_1 = arith.constant 0 : i32
    return %c0_i32, %c0_i32_0 : i32, i32
  }
  func.func @transform_2(%arg0: i32) -> (i32, i32) {
    %c0_i32 = arith.constant 0 : i32
    %c0_i32_0 = arith.constant 0 : i32
    %c0_i32_1 = arith.constant 0 : i32
    return %c0_i32, %c0_i32_0 : i32, i32
  }
  func.func @transform_3(%arg0: i32) -> (i32, i32) {
    %c0_i32 = arith.constant 0 : i32
    %c0_i32_0 = arith.constant 0 : i32
    %c0_i32_1 = arith.constant 0 : i32
    return %c0_i32, %c0_i32_0 : i32, i32
  }
  func.func @transform_4(%arg0: i32) -> (i32, i32) {
    %c0_i32 = arith.constant 0 : i32
    %c0_i32_0 = arith.constant 0 : i32
    return %c0_i32, %arg0 : i32, i32
  }
  func.func @transform_5(%arg0: i32) -> (i32, i32) {
    %c0_i32 = arith.constant 0 : i32
    %c0_i32_0 = arith.constant 0 : i32
    return %c0_i32, %arg0 : i32, i32
  }
}

</mosaic_0001>

<llo_original>
// kernel: tpu_custom_call.1
$region0: #{tpu_custom_call.1}
  #allocation0 [shape = 'u32[]', space=smem, size = 0x4, offset = 0x4, fixed_abs, tag = 'smem constant byte address 0x4 - core index']
  #allocation1 [shape = 'u32[72,128]{1,0:T(1,128)}', space=vmem, size = 0x9000, scoped, tag = 'internal scratch']
  %s0 = inlined_call_operand.vmem [shape: f32[8,512], index: 0, kind: input, shape index: {}]
  %s1 = inlined_call_operand.vmem [shape: f32[128,8], index: 1, kind: input, shape index: {}]
  %s2 = inlined_call_operand.vmem [shape: f32[8,128], index: 2, kind: input, shape index: {}]
  %s3 = inlined_call_operand.vmem [shape: f32[128,1], index: 3, kind: input, shape index: {}]
  %s4 = inlined_call_operand.hbm [shape: f32[8,512], index: 4, kind: output, shape index: {0}]
  %s5 = inlined_call_operand.hbm [shape: f32[1,512], index: 5, kind: output, shape index: {1}]
  %6 = xla_tuple %s4, %s5
  %s7 = sld [smem:[#allocation0]]
  $region34: #{tpu_custom_call.1} parent=0
    _
  %s9 = ssub.s32 1, %s7
  %s10 = scalar_select 0, %s9, %s7
  $region1: #{tpu_custom_call.1} parent=0
    #allocation2 [shape = 'u8[16384]{0}', space=vmem, size = 0x4000, scoped, tag = 'output window, operand 0, single buffered']
    #allocation3 [shape = 's32[1]{0}', space=sflag, size = 0x4, scoped, tag = 'scoped memory for tpu_custom_call.1']
    #allocation4 [shape = 'u8[2048]{0}', space=vmem, size = 0x800, scoped, tag = 'output window, operand 1, single buffered']
    #allocation5 [shape = 's32[1]{0}', space=sflag, size = 0x4, scoped, tag = 'scoped memory for tpu_custom_call.1']
    %11 = vsyncpa [#allocation3], 0
    %12 = vsyncpa [#allocation5], 0
    // Predicated region
    $region2: #{tpu_custom_call.1} parent=1 // pred_check
      _
    $region3: #{tpu_custom_call.1} parent=1 // pred_check_branch
      %14 = sbr.rel (0) target = $region5
    $region4: #{tpu_custom_call.1} parent=1 // pred_region
      _
    $region5: #{tpu_custom_call.1} parent=1 // pred_fallthru
      _
    // Predicated region
    $region6: #{tpu_custom_call.1} parent=1 // pred_check
      _
    $region7: #{tpu_custom_call.1} parent=1 // pred_check_branch
      %16 = sbr.rel (0) target = $region9
    $region8: #{tpu_custom_call.1} parent=1 // pred_region
      _
    $region9: #{tpu_custom_call.1} parent=1 // pred_fallthru
      _
    // Predicated region
    $region10: #{tpu_custom_call.1} parent=1 // pred_check
      _
    $region11: #{tpu_custom_call.1} parent=1 // pred_check_branch
      %18 = sbr.rel (0) target = $region13
    $region12: #{tpu_custom_call.1} parent=1 // pred_region
      _
    $region13: #{tpu_custom_call.1} parent=1 // pred_fallthru
      _
    // Predicated region
    $region14: #{tpu_custom_call.1} parent=1 // pred_check
      _
    $region15: #{tpu_custom_call.1} parent=1 // pred_check_branch
      %20 = sbr.rel (0) target = $region17
    $region16: #{tpu_custom_call.1} parent=1 // pred_region
      _
    $region17: #{tpu_custom_call.1} parent=1 // pred_fallthru
      _
    %v21 = vld [vmem:[%s0] sm:$0xff]
    %v22 = vld [vmem:[%s0 + $0x8] sm:$0xff]
    %v23 = vld [vmem:[%s0 + $0x10] sm:$0xff]
    %v24 = vld [vmem:[%s0 + $0x18] sm:$0xff]
    %v25 = vld [vmem:[%s1] sm:$0xff]
    %v26 = vld [vmem:[%s1 + $0x8] sm:$0xff]
    %v27 = vld [vmem:[%s1 + $0x10] sm:$0xff]
    %v28 = vld [vmem:[%s1 + $0x18] sm:$0xff]
    %v29 = vld [vmem:[%s1 + $0x20] sm:$0xff]
    %v30 = vld [vmem:[%s1 + $0x28] sm:$0xff]
    %v31 = vld [vmem:[%s1 + $0x30] sm:$0xff]
    %v32 = vld [vmem:[%s1 + $0x38] sm:$0xff]
    %v33 = vld [vmem:[%s1 + $0x40] sm:$0xff]
    %v34 = vld [vmem:[%s1 + $0x48] sm:$0xff]
    %v35 = vld [vmem:[%s1 + $0x50] sm:$0xff]
    %v36 = vld [vmem:[%s1 + $0x58] sm:$0xff]
    %v37 = vld [vmem:[%s1 + $0x60] sm:$0xff]
    %v38 = vld [vmem:[%s1 + $0x68] sm:$0xff]
    %v39 = vld [vmem:[%s1 + $0x70] sm:$0xff]
    %v40 = vld [vmem:[%s1 + $0x78] sm:$0xff]
    %v41 = vld [vmem:[%s2] sm:$0xff]
    %v42 = vld [vmem:[%s3] sm:$0xff]
    %v43 = vld [vmem:[%s3 + $0x8] sm:$0xff]
    %v44 = vld [vmem:[%s3 + $0x10] sm:$0xff]
    %v45 = vld [vmem:[%s3 + $0x18] sm:$0xff]
    %v46 = vld [vmem:[%s3 + $0x20] sm:$0xff]
    %v47 = vld [vmem:[%s3 + $0x28] sm:$0xff]
    %v48 = vld [vmem:[%s3 + $0x30] sm:$0xff]
    %v49 = vld [vmem:[%s3 + $0x38] sm:$0xff]
    %v50 = vld [vmem:[%s3 + $0x40] sm:$0xff]
    %v51 = vld [vmem:[%s3 + $0x48] sm:$0xff]
    %v52 = vld [vmem:[%s3 + $0x50] sm:$0xff]
    %v53 = vld [vmem:[%s3 + $0x58] sm:$0xff]
    %v54 = vld [vmem:[%s3 + $0x60] sm:$0xff]
    %v55 = vld [vmem:[%s3 + $0x68] sm:$0xff]
    %v56 = vld [vmem:[%s3 + $0x70] sm:$0xff]
    %v57 = vld [vmem:[%s3 + $0x78] sm:$0xff]
    %vm58 = vcmask 64512
    %v60 = vsel %vm58, %v25, 0
    %v63 = vsel %vm58, %v26, 0
    %v66 = vsel %vm58, %v27, 0
    %v69 = vsel %vm58, %v28, 0
    %v72 = vsel %vm58, %v29, 0
    %v75 = vsel %vm58, %v30, 0
    %v78 = vsel %vm58, %v31, 0
    %v81 = vsel %vm58, %v32, 0
    %v84 = vsel %vm58, %v33, 0
    %v87 = vsel %vm58, %v34, 0
    %v90 = vsel %vm58, %v35, 0
    %v93 = vsel %vm58, %v36, 0
    %v96 = vsel %vm58, %v37, 0
    %v99 = vsel %vm58, %v38, 0
    %v102 = vsel %vm58, %v39, 0
    %v105 = vsel %vm58, %v40, 0
    %107 = vmatpush.msra.mxu0 0.0
    %108 = vmatpush.msra.mxu0 0.0
    %109 = vmatpush.msra.mxu0 0.0
    %110 = vmatpush.msra.mxu0 0.0
    %111 = vmatpush.msra.mxu0 0.0
    %112 = vmatpush.msra.mxu0 0.0
    %113 = vmatpush.msra.mxu0 0.0
    %114 = vmatpush.msra.mxu0 0.0
    %115 = vmatpush.msra.mxu0 0.0
    %116 = vmatpush.msra.mxu0 0.0
    %117 = vmatpush.msra.mxu0 0.0
    %118 = vmatpush.msra.mxu0 0.0
    %119 = vmatpush.msra.mxu0 0.0
    %120 = vmatpush.msra.mxu0 0.0
    %121 = vmatpush.msra.mxu0 0.0
    %122 = vmatpush.msra.mxu0 %v21
    %123 = vmatmul.f32.gmra.mxu0 %v60
    %v124 = vpop.f32.mrf.mxu0
    %v125 = vadd.f32 0.0, %v124
    %126 = vmatmul.f32.gmra.mxu0 %v63
    %v127 = vpop.f32.mrf.mxu0
    %v128 = vadd.f32 0.0, %v127
    %129 = vmatmul.f32.gmra.mxu0 %v66
    %v130 = vpop.f32.mrf.mxu0
    %v131 = vadd.f32 0.0, %v130
    %132 = vmatmul.f32.gmra.mxu0 %v69
    %v133 = vpop.f32.mrf.mxu0
    %v134 = vadd.f32 0.0, %v133
    %135 = vmatmul.f32.gmra.mxu0 %v72
    %v136 = vpop.f32.mrf.mxu0
    %v137 = vadd.f32 0.0, %v136
    %138 = vmatmul.f32.gmra.mxu0 %v75
    %v139 = vpop.f32.mrf.mxu0
    %v140 = vadd.f32 0.0, %v139
    %141 = vmatmul.f32.gmra.mxu0 %v78
    %v142 = vpop.f32.mrf.mxu0
    %v143 = vadd.f32 0.0, %v142
    %144 = vmatmul.f32.gmra.mxu0 %v81
    %v145 = vpop.f32.mrf.mxu0
    %v146 = vadd.f32 0.0, %v145
    %147 = vmatmul.f32.gmra.mxu0 %v84
    %v148 = vpop.f32.mrf.mxu0
    %v149 = vadd.f32 0.0, %v148
    %150 = vmatmul.f32.gmra.mxu0 %v87
    %v151 = vpop.f32.mrf.mxu0
    %v152 = vadd.f32 0.0, %v151
    %153 = vmatmul.f32.gmra.mxu0 %v90
    %v154 = vpop.f32.mrf.mxu0
    %v155 = vadd.f32 0.0, %v154
    %156 = vmatmul.f32.gmra.mxu0 %v93
    %v157 = vpop.f32.mrf.mxu0
    %v158 = vadd.f32 0.0, %v157
    %159 = vmatmul.f32.gmra.mxu0 %v96
    %v160 = vpop.f32.mrf.mxu0
    %v161 = vadd.f32 0.0, %v160
    %162 = vmatmul.f32.gmra.mxu0 %v99
    %v163 = vpop.f32.mrf.mxu0
    %v164 = vadd.f32 0.0, %v163
    %165 = vmatmul.f32.gmra.mxu0 %v102
    %v166 = vpop.f32.mrf.mxu0
    %v167 = vadd.f32 0.0, %v166
    %168 = vmatmul.f32.gmra.mxu0 %v105
    %v169 = vpop.f32.mrf.mxu0
    %v170 = vadd.f32 0.0, %v169
    %171 = vdwg.mxu0
    %172 = vmatpush.msra.mxu0 0.0
    %173 = vmatpush.msra.mxu0 0.0
    %174 = vmatpush.msra.mxu0 0.0
    %175 = vmatpush.msra.mxu0 0.0
    %176 = vmatpush.msra.mxu0 0.0
    %177 = vmatpush.msra.mxu0 0.0
    %178 = vmatpush.msra.mxu0 0.0
    %179 = vmatpush.msra.mxu0 0.0
    %180 = vmatpush.msra.mxu0 0.0
    %181 = vmatpush.msra.mxu0 0.0
    %182 = vmatpush.msra.mxu0 0.0
    %183 = vmatpush.msra.mxu0 0.0
    %184 = vmatpush.msra.mxu0 0.0
    %185 = vmatpush.msra.mxu0 0.0
    %186 = vmatpush.msra.mxu0 0.0
    %187 = vmatpush.msra.mxu0 %v22
    %188 = vmatmul.f32.gmra.mxu0 %v60
    %v189 = vpop.f32.mrf.mxu0
    %v190 = vadd.f32 0.0, %v189
    %191 = vmatmul.f32.gmra.mxu0 %v63
    %v192 = vpop.f32.mrf.mxu0
    %v193 = vadd.f32 0.0, %v192
    %194 = vmatmul.f32.gmra.mxu0 %v66
    %v195 = vpop.f32.mrf.mxu0
    %v196 = vadd.f32 0.0, %v195
    %197 = vmatmul.f32.gmra.mxu0 %v69
    %v198 = vpop.f32.mrf.mxu0
    %v199 = vadd.f32 0.0, %v198
    %200 = vmatmul.f32.gmra.mxu0 %v72
    %v201 = vpop.f32.mrf.mxu0
    %v202 = vadd.f32 0.0, %v201
    %203 = vmatmul.f32.gmra.mxu0 %v75
    %v204 = vpop.f32.mrf.mxu0
    %v205 = vadd.f32 0.0, %v204
    %206 = vmatmul.f32.gmra.mxu0 %v78
    %v207 = vpop.f32.mrf.mxu0
    %v208 = vadd.f32 0.0, %v207
    %209 = vmatmul.f32.gmra.mxu0 %v81
    %v210 = vpop.f32.mrf.mxu0
    %v211 = vadd.f32 0.0, %v210
    %212 = vmatmul.f32.gmra.mxu0 %v84
    %v213 = vpop.f32.mrf.mxu0
    %v214 = vadd.f32 0.0, %v213
    %215 = vmatmul.f32.gmra.mxu0 %v87
    %v216 = vpop.f32.mrf.mxu0
    %v217 = vadd.f32 0.0, %v216
    %218 = vmatmul.f32.gmra.mxu0 %v90
    %v219 = vpop.f32.mrf.mxu0
    %v220 = vadd.f32 0.0, %v219
    %221 = vmatmul.f32.gmra.mxu0 %v93
    %v222 = vpop.f32.mrf.mxu0
    %v223 = vadd.f32 0.0, %v222
    %224 = vmatmul.f32.gmra.mxu0 %v96
    %v225 = vpop.f32.mrf.mxu0
    %v226 = vadd.f32 0.0, %v225
    %227 = vmatmul.f32.gmra.mxu0 %v99
    %v228 = vpop.f32.mrf.mxu0
    %v229 = vadd.f32 0.0, %v228
    %230 = vmatmul.f32.gmra.mxu0 %v102
    %v231 = vpop.f32.mrf.mxu0
    %v232 = vadd.f32 0.0, %v231
    %233 = vmatmul.f32.gmra.mxu0 %v105
    %v234 = vpop.f32.mrf.mxu0
    %v235 = vadd.f32 0.0, %v234
    %236 = vdwg.mxu0
    %237 = vmatpush.msra.mxu0 0.0
    %238 = vmatpush.msra.mxu0 0.0
    %239 = vmatpush.msra.mxu0 0.0
    %240 = vmatpush.msra.mxu0 0.0
    %241 = vmatpush.msra.mxu0 0.0
    %242 = vmatpush.msra.mxu0 0.0
    %243 = vmatpush.msra.mxu0 0.0
    %244 = vmatpush.msra.mxu0 0.0
    %245 = vmatpush.msra.mxu0 0.0
    %246 = vmatpush.msra.mxu0 0.0
    %247 = vmatpush.msra.mxu0 0.0
    %248 = vmatpush.msra.mxu0 0.0
    %249 = vmatpush.msra.mxu0 0.0
    %250 = vmatpush.msra.mxu0 0.0
    %251 = vmatpush.msra.mxu0 0.0
    %252 = vmatpush.msra.mxu0 %v23
    %253 = vmatmul.f32.gmra.mxu0 %v60
    %v254 = vpop.f32.mrf.mxu0
    %v255 = vadd.f32 0.0, %v254
    %256 = vmatmul.f32.gmra.mxu0 %v63
    %v257 = vpop.f32.mrf.mxu0
    %v258 = vadd.f32 0.0, %v257
    %259 = vmatmul.f32.gmra.mxu0 %v66
    %v260 = vpop.f32.mrf.mxu0
    %v261 = vadd.f32 0.0, %v260
    %262 = vmatmul.f32.gmra.mxu0 %v69
    %v263 = vpop.f32.mrf.mxu0
    %v264 = vadd.f32 0.0, %v263
    %265 = vmatmul.f32.gmra.mxu0 %v72
    %v266 = vpop.f32.mrf.mxu0
    %v267 = vadd.f32 0.0, %v266
    %268 = vmatmul.f32.gmra.mxu0 %v75
    %v269 = vpop.f32.mrf.mxu0
    %v270 = vadd.f32 0.0, %v269
    %271 = vmatmul.f32.gmra.mxu0 %v78
    %v272 = vpop.f32.mrf.mxu0
    %v273 = vadd.f32 0.0, %v272
    %274 = vmatmul.f32.gmra.mxu0 %v81
    %v275 = vpop.f32.mrf.mxu0
    %v276 = vadd.f32 0.0, %v275
    %277 = vmatmul.f32.gmra.mxu0 %v84
    %v278 = vpop.f32.mrf.mxu0
    %v279 = vadd.f32 0.0, %v278
    %280 = vmatmul.f32.gmra.mxu0 %v87
    %v281 = vpop.f32.mrf.mxu0
    %v282 = vadd.f32 0.0, %v281
    %283 = vmatmul.f32.gmra.mxu0 %v90
    %v284 = vpop.f32.mrf.mxu0
    %v285 = vadd.f32 0.0, %v284
    %286 = vmatmul.f32.gmra.mxu0 %v93
    %v287 = vpop.f32.mrf.mxu0
    %v288 = vadd.f32 0.0, %v287
    %289 = vmatmul.f32.gmra.mxu0 %v96
    %v290 = vpop.f32.mrf.mxu0
    %v291 = vadd.f32 0.0, %v290
    %292 = vmatmul.f32.gmra.mxu0 %v99
    %v293 = vpop.f32.mrf.mxu0
    %v294 = vadd.f32 0.0, %v293
    %295 = vmatmul.f32.gmra.mxu0 %v102
    %v296 = vpop.f32.mrf.mxu0
    %v297 = vadd.f32 0.0, %v296
    %298 = vmatmul.f32.gmra.mxu0 %v105
    %v299 = vpop.f32.mrf.mxu0
    %v300 = vadd.f32 0.0, %v299
    %301 = vdwg.mxu0
    %302 = vmatpush.msra.mxu0 0.0
    %303 = vmatpush.msra.mxu0 0.0
    %304 = vmatpush.msra.mxu0 0.0
    %305 = vmatpush.msra.mxu0 0.0
    %306 = vmatpush.msra.mxu0 0.0
    %307 = vmatpush.msra.mxu0 0.0
    %308 = vmatpush.msra.mxu0 0.0
    %309 = vmatpush.msra.mxu0 0.0
    %310 = vmatpush.msra.mxu0 0.0
    %311 = vmatpush.msra.mxu0 0.0
    %312 = vmatpush.msra.mxu0 0.0
    %313 = vmatpush.msra.mxu0 0.0
    %314 = vmatpush.msra.mxu0 0.0
    %315 = vmatpush.msra.mxu0 0.0
    %316 = vmatpush.msra.mxu0 0.0
    %317 = vmatpush.msra.mxu0 %v24
    %318 = vmatmul.f32.gmra.mxu0 %v60
    %v319 = vpop.f32.mrf.mxu0
    %v320 = vadd.f32 0.0, %v319
    %321 = vmatmul.f32.gmra.mxu0 %v63
    %v322 = vpop.f32.mrf.mxu0
    %v323 = vadd.f32 0.0, %v322
    %324 = vmatmul.f32.gmra.mxu0 %v66
    %v325 = vpop.f32.mrf.mxu0
    %v326 = vadd.f32 0.0, %v325
    %327 = vmatmul.f32.gmra.mxu0 %v69
    %v328 = vpop.f32.mrf.mxu0
    %v329 = vadd.f32 0.0, %v328
    %330 = vmatmul.f32.gmra.mxu0 %v72
    %v331 = vpop.f32.mrf.mxu0
    %v332 = vadd.f32 0.0, %v331
    %333 = vmatmul.f32.gmra.mxu0 %v75
    %v334 = vpop.f32.mrf.mxu0
    %v335 = vadd.f32 0.0, %v334
    %336 = vmatmul.f32.gmra.mxu0 %v78
    %v337 = vpop.f32.mrf.mxu0
    %v338 = vadd.f32 0.0, %v337
    %339 = vmatmul.f32.gmra.mxu0 %v81
    %v340 = vpop.f32.mrf.mxu0
    %v341 = vadd.f32 0.0, %v340
    %342 = vmatmul.f32.gmra.mxu0 %v84
    %v343 = vpop.f32.mrf.mxu0
    %v344 = vadd.f32 0.0, %v343
    %345 = vmatmul.f32.gmra.mxu0 %v87
    %v346 = vpop.f32.mrf.mxu0
    %v347 = vadd.f32 0.0, %v346
    %348 = vmatmul.f32.gmra.mxu0 %v90
    %v349 = vpop.f32.mrf.mxu0
    %v350 = vadd.f32 0.0, %v349
    %351 = vmatmul.f32.gmra.mxu0 %v93
    %v352 = vpop.f32.mrf.mxu0
    %v353 = vadd.f32 0.0, %v352
    %354 = vmatmul.f32.gmra.mxu0 %v96
    %v355 = vpop.f32.mrf.mxu0
    %v356 = vadd.f32 0.0, %v355
    %357 = vmatmul.f32.gmra.mxu0 %v99
    %v358 = vpop.f32.mrf.mxu0
    %v359 = vadd.f32 0.0, %v358
    %360 = vmatmul.f32.gmra.mxu0 %v102
    %v361 = vpop.f32.mrf.mxu0
    %v362 = vadd.f32 0.0, %v361
    %363 = vmatmul.f32.gmra.mxu0 %v105
    %v364 = vpop.f32.mrf.mxu0
    %v365 = vadd.f32 0.0, %v364
    %366 = vdwg.mxu0
    %v367 = vmul.f32 %v125, 2.0
    %v368 = vmul.f32 %v190, 2.0
    %v369 = vmul.f32 %v255, 2.0
    %v370 = vmul.f32 %v320, 2.0
    %v371 = vmul.f32 %v128, 2.0
    %v372 = vmul.f32 %v193, 2.0
    %v373 = vmul.f32 %v258, 2.0
    %v374 = vmul.f32 %v323, 2.0
    %v375 = vmul.f32 %v131, 2.0
    %v376 = vmul.f32 %v196, 2.0
    %v377 = vmul.f32 %v261, 2.0
    %v378 = vmul.f32 %v326, 2.0
    %v379 = vmul.f32 %v134, 2.0
    %v380 = vmul.f32 %v199, 2.0
    %v381 = vmul.f32 %v264, 2.0
    %v382 = vmul.f32 %v329, 2.0
    %v383 = vmul.f32 %v137, 2.0
    %v384 = vmul.f32 %v202, 2.0
    %v385 = vmul.f32 %v267, 2.0
    %v386 = vmul.f32 %v332, 2.0
    %v387 = vmul.f32 %v140, 2.0
    %v388 = vmul.f32 %v205, 2.0
    %v389 = vmul.f32 %v270, 2.0
    %v390 = vmul.f32 %v335, 2.0
    %v391 = vmul.f32 %v143, 2.0
    %v392 = vmul.f32 %v208, 2.0
    %v393 = vmul.f32 %v273, 2.0
    %v394 = vmul.f32 %v338, 2.0
    %v395 = vmul.f32 %v146, 2.0
    %v396 = vmul.f32 %v211, 2.0
    %v397 = vmul.f32 %v276, 2.0
    %v398 = vmul.f32 %v341, 2.0
    %v399 = vmul.f32 %v149, 2.0
    %v400 = vmul.f32 %v214, 2.0
    %v401 = vmul.f32 %v279, 2.0
    %v402 = vmul.f32 %v344, 2.0
    %v403 = vmul.f32 %v152, 2.0
    %v404 = vmul.f32 %v217, 2.0
    %v405 = vmul.f32 %v282, 2.0
    %v406 = vmul.f32 %v347, 2.0
    %v407 = vmul.f32 %v155, 2.0
    %v408 = vmul.f32 %v220, 2.0
    %v409 = vmul.f32 %v285, 2.0
    %v410 = vmul.f32 %v350, 2.0
    %v411 = vmul.f32 %v158, 2.0
    %v412 = vmul.f32 %v223, 2.0
    %v413 = vmul.f32 %v288, 2.0
    %v414 = vmul.f32 %v353, 2.0
    %v415 = vmul.f32 %v161, 2.0
    %v416 = vmul.f32 %v226, 2.0
    %v417 = vmul.f32 %v291, 2.0
    %v418 = vmul.f32 %v356, 2.0
    %v419 = vmul.f32 %v164, 2.0
    %v420 = vmul.f32 %v229, 2.0
    %v421 = vmul.f32 %v294, 2.0
    %v422 = vmul.f32 %v359, 2.0
    %v423 = vmul.f32 %v167, 2.0
    %v424 = vmul.f32 %v232, 2.0
    %v425 = vmul.f32 %v297, 2.0
    %v426 = vmul.f32 %v362, 2.0
    %v427 = vmul.f32 %v170, 2.0
    %v428 = vmul.f32 %v235, 2.0
    %v429 = vmul.f32 %v300, 2.0
    %v430 = vmul.f32 %v365, 2.0
    %432 = vset.pattern.permute.xlu0 0
    %433 = vperm.xlu0 %432, %v42
    %v434 = vpop.permute.xlu0 %433
    %437 = vset.pattern.permute.xlu0 0
    %438 = vperm.xlu0 %437, %v43
    %v439 = vpop.permute.xlu0 %438
    %442 = vset.pattern.permute.xlu0 0
    %443 = vperm.xlu0 %442, %v44
    %v444 = vpop.permute.xlu0 %443
    %447 = vset.pattern.permute.xlu0 0
    %448 = vperm.xlu0 %447, %v45
    %v449 = vpop.permute.xlu0 %448
    %452 = vset.pattern.permute.xlu0 0
    %453 = vperm.xlu0 %452, %v46
    %v454 = vpop.permute.xlu0 %453
    %457 = vset.pattern.permute.xlu0 0
    %458 = vperm.xlu0 %457, %v47
    %v459 = vpop.permute.xlu0 %458
    %462 = vset.pattern.permute.xlu0 0
    %463 = vperm.xlu0 %462, %v48
    %v464 = vpop.permute.xlu0 %463
    %467 = vset.pattern.permute.xlu0 0
    %468 = vperm.xlu0 %467, %v49
    %v469 = vpop.permute.xlu0 %468
    %472 = vset.pattern.permute.xlu0 0
    %473 = vperm.xlu0 %472, %v50
    %v474 = vpop.permute.xlu0 %473
    %477 = vset.pattern.permute.xlu0 0
    %478 = vperm.xlu0 %477, %v51
    %v479 = vpop.permute.xlu0 %478
    %482 = vset.pattern.permute.xlu0 0
    %483 = vperm.xlu0 %482, %v52
    %v484 = vpop.permute.xlu0 %483
    %487 = vset.pattern.permute.xlu0 0
    %488 = vperm.xlu0 %487, %v53
    %v489 = vpop.permute.xlu0 %488
    %492 = vset.pattern.permute.xlu0 0
    %493 = vperm.xlu0 %492, %v54
    %v494 = vpop.permute.xlu0 %493
    %497 = vset.pattern.permute.xlu0 0
    %498 = vperm.xlu0 %497, %v55
    %v499 = vpop.permute.xlu0 %498
    %502 = vset.pattern.permute.xlu0 0
    %503 = vperm.xlu0 %502, %v56
    %v504 = vpop.permute.xlu0 %503
    %507 = vset.pattern.permute.xlu0 0
    %508 = vperm.xlu0 %507, %v57
    %v509 = vpop.permute.xlu0 %508
    %v511 = vsub.f32 %v434, %v367
    %v512 = vsub.f32 %v434, %v368
    %v513 = vsub.f32 %v434, %v369
    %v514 = vsub.f32 %v434, %v370
    %v515 = vsub.f32 %v439, %v371
    %v516 = vsub.f32 %v439, %v372
    %v517 = vsub.f32 %v439, %v373
    %v518 = vsub.f32 %v439, %v374
    %v519 = vsub.f32 %v444, %v375
    %v520 = vsub.f32 %v444, %v376
    %v521 = vsub.f32 %v444, %v377
    %v522 = vsub.f32 %v444, %v378
    %v523 = vsub.f32 %v449, %v379
    %v524 = vsub.f32 %v449, %v380
    %v525 = vsub.f32 %v449, %v381
    %v526 = vsub.f32 %v449, %v382
    %v527 = vsub.f32 %v454, %v383
    %v528 = vsub.f32 %v454, %v384
    %v529 = vsub.f32 %v454, %v385
    %v530 = vsub.f32 %v454, %v386
    %v531 = vsub.f32 %v459, %v387
    %v532 = vsub.f32 %v459, %v388
    %v533 = vsub.f32 %v459, %v389
    %v534 = vsub.f32 %v459, %v390
    %v535 = vsub.f32 %v464, %v391
    %v536 = vsub.f32 %v464, %v392
    %v537 = vsub.f32 %v464, %v393
    %v538 = vsub.f32 %v464, %v394
    %v539 = vsub.f32 %v469, %v395
    %v540 = vsub.f32 %v469, %v396
    %v541 = vsub.f32 %v469, %v397
    %v542 = vsub.f32 %v469, %v398
    %v543 = vsub.f32 %v474, %v399
    %v544 = vsub.f32 %v474, %v400
    %v545 = vsub.f32 %v474, %v401
    %v546 = vsub.f32 %v474, %v402
    %v547 = vsub.f32 %v479, %v403
    %v548 = vsub.f32 %v479, %v404
    %v549 = vsub.f32 %v479, %v405
    %v550 = vsub.f32 %v479, %v406
    %v551 = vsub.f32 %v484, %v407
    %v552 = vsub.f32 %v484, %v408
    %v553 = vsub.f32 %v484, %v409
    %v554 = vsub.f32 %v484, %v410
    %v555 = vsub.f32 %v489, %v411
    %v556 = vsub.f32 %v489, %v412
    %v557 = vsub.f32 %v489, %v413
    %v558 = vsub.f32 %v489, %v414
    %v559 = vsub.f32 %v494, %v415
    %v560 = vsub.f32 %v494, %v416
    %v561 = vsub.f32 %v494, %v417
    %v562 = vsub.f32 %v494, %v418
    %v563 = vsub.f32 %v499, %v419
    %v564 = vsub.f32 %v499, %v420
    %v565 = vsub.f32 %v499, %v421
    %v566 = vsub.f32 %v499, %v422
    %v567 = vsub.f32 %v504, %v423
    %v568 = vsub.f32 %v504, %v424
    %v569 = vsub.f32 %v504, %v425
    %v570 = vsub.f32 %v504, %v426
    %v571 = vsub.f32 %v509, %v427
    %v572 = vsub.f32 %v509, %v428
    %v573 = vsub.f32 %v509, %v429
    %v574 = vsub.f32 %v509, %v430
    %v575 = vmin.f32 %v511, %v515
    %v576 = vmin.f32 %v575, %v519
    %v577 = vmin.f32 %v576, %v523
    %v578 = vmin.f32 %v577, %v527
    %v579 = vmin.f32 %v578, %v531
    %v580 = vmin.f32 %v579, %v535
    %v581 = vmin.f32 %v580, %v539
    %v582 = vmin.f32 %v581, %v543
    %v583 = vmin.f32 %v582, %v547
    %v584 = vmin.f32 %v583, %v551
    %v585 = vmin.f32 %v584, %v555
    %v586 = vmin.f32 %v585, %v559
    %v587 = vmin.f32 %v586, %v563
    %v588 = vmin.f32 %v587, %v567
    %v589 = vmin.f32 %v588, %v571
    %v590 = vrot.slane %v589, 4
    %v591 = vmin.f32 %v589, %v590
    %v592 = vrot.slane %v591, 2
    %v593 = vmin.f32 %v591, %v592
    %v594 = vrot.slane %v593, 1
    %v595 = vmin.f32 %v593, %v594
    %v596 = vmin.f32 %v512, %v516
    %v597 = vmin.f32 %v596, %v520
    %v598 = vmin.f32 %v597, %v524
    %v599 = vmin.f32 %v598, %v528
    %v600 = vmin.f32 %v599, %v532
    %v601 = vmin.f32 %v600, %v536
    %v602 = vmin.f32 %v601, %v540
    %v603 = vmin.f32 %v602, %v544
    %v604 = vmin.f32 %v603, %v548
    %v605 = vmin.f32 %v604, %v552
    %v606 = vmin.f32 %v605, %v556
    %v607 = vmin.f32 %v606, %v560
    %v608 = vmin.f32 %v607, %v564
    %v609 = vmin.f32 %v608, %v568
    %v610 = vmin.f32 %v609, %v572
    %v611 = vrot.slane %v610, 4
    %v612 = vmin.f32 %v610, %v611
    %v613 = vrot.slane %v612, 2
    %v614 = vmin.f32 %v612, %v613
    %v615 = vrot.slane %v614, 1
    %v616 = vmin.f32 %v614, %v615
    %v617 = vmin.f32 %v513, %v517
    %v618 = vmin.f32 %v617, %v521
    %v619 = vmin.f32 %v618, %v525
    %v620 = vmin.f32 %v619, %v529
    %v621 = vmin.f32 %v620, %v533
    %v622 = vmin.f32 %v621, %v537
    %v623 = vmin.f32 %v622, %v541
    %v624 = vmin.f32 %v623, %v545
    %v625 = vmin.f32 %v624, %v549
    %v626 = vmin.f32 %v625, %v553
    %v627 = vmin.f32 %v626, %v557
    %v628 = vmin.f32 %v627, %v561
    %v629 = vmin.f32 %v628, %v565
    %v630 = vmin.f32 %v629, %v569
    %v631 = vmin.f32 %v630, %v573
    %v632 = vrot.slane %v631, 4
    %v633 = vmin.f32 %v631, %v632
    %v634 = vrot.slane %v633, 2
    %v635 = vmin.f32 %v633, %v634
    %v636 = vrot.slane %v635, 1
    %v637 = vmin.f32 %v635, %v636
    %v638 = vmin.f32 %v514, %v518
    %v639 = vmin.f32 %v638, %v522
    %v640 = vmin.f32 %v639, %v526
    %v641 = vmin.f32 %v640, %v530
    %v642 = vmin.f32 %v641, %v534
    %v643 = vmin.f32 %v642, %v538
    %v644 = vmin.f32 %v643, %v542
    %v645 = vmin.f32 %v644, %v546
    %v646 = vmin.f32 %v645, %v550
    %v647 = vmin.f32 %v646, %v554
    %v648 = vmin.f32 %v647, %v558
    %v649 = vmin.f32 %v648, %v562
    %v650 = vmin.f32 %v649, %v566
    %v651 = vmin.f32 %v650, %v570
    %v652 = vmin.f32 %v651, %v574
    %v653 = vrot.slane %v652, 4
    %v654 = vmin.f32 %v652, %v653
    %v655 = vrot.slane %v654, 2
    %v656 = vmin.f32 %v654, %v655
    %v657 = vrot.slane %v656, 1
    %v658 = vmin.f32 %v656, %v657
    %v659 = vlaneseq
    %v660 = vshrl.u32 %v659, 7
    %v661 = vadd.s32 %v660, 8
    %v662 = vadd.s32 %v660, 16
    %v663 = vadd.s32 %v660, 24
    %v664 = vadd.s32 %v660, 32
    %v665 = vadd.s32 %v660, 40
    %v666 = vadd.s32 %v660, 48
    %v667 = vadd.s32 %v660, 56
    %v668 = vadd.s32 %v660, 64
    %v669 = vadd.s32 %v660, 72
    %v670 = vadd.s32 %v660, 80
    %v671 = vadd.s32 %v660, 88
    %v672 = vadd.s32 %v660, 96
    %v673 = vadd.s32 %v660, 104
    %v674 = vadd.s32 %v660, 112
    %v675 = vadd.s32 %v660, 120
    %vm676 = vcmp.eq.f32.partialorder %v511, %v595
    %vm677 = vcmp.eq.f32.partialorder %v512, %v616
    %vm678 = vcmp.eq.f32.partialorder %v513, %v637
    %vm679 = vcmp.eq.f32.partialorder %v514, %v658
    %vm680 = vcmp.eq.f32.partialorder %v515, %v595
    %vm681 = vcmp.eq.f32.partialorder %v516, %v616
    %vm682 = vcmp.eq.f32.partialorder %v517, %v637
    %vm683 = vcmp.eq.f32.partialorder %v518, %v658
    %vm684 = vcmp.eq.f32.partialorder %v519, %v595
    %vm685 = vcmp.eq.f32.partialorder %v520, %v616
    %vm686 = vcmp.eq.f32.partialorder %v521, %v637
    %vm687 = vcmp.eq.f32.partialorder %v522, %v658
    %vm688 = vcmp.eq.f32.partialorder %v523, %v595
    %vm689 = vcmp.eq.f32.partialorder %v524, %v616
    %vm690 = vcmp.eq.f32.partialorder %v525, %v637
    %vm691 = vcmp.eq.f32.partialorder %v526, %v658
    %vm692 = vcmp.eq.f32.partialorder %v527, %v595
    %vm693 = vcmp.eq.f32.partialorder %v528, %v616
    %vm694 = vcmp.eq.f32.partialorder %v529, %v637
    %vm695 = vcmp.eq.f32.partialorder %v530, %v658
    %vm696 = vcmp.eq.f32.partialorder %v531, %v595
    %vm697 = vcmp.eq.f32.partialorder %v532, %v616
    %vm698 = vcmp.eq.f32.partialorder %v533, %v637
    %vm699 = vcmp.eq.f32.partialorder %v534, %v658
    %vm700 = vcmp.eq.f32.partialorder %v535, %v595
    %vm701 = vcmp.eq.f32.partialorder %v536, %v616
    %vm702 = vcmp.eq.f32.partialorder %v537, %v637
    %vm703 = vcmp.eq.f32.partialorder %v538, %v658
    %vm704 = vcmp.eq.f32.partialorder %v539, %v595
    %vm705 = vcmp.eq.f32.partialorder %v540, %v616
    %vm706 = vcmp.eq.f32.partialorder %v541, %v637
    %vm707 = vcmp.eq.f32.partialorder %v542, %v658
    %vm708 = vcmp.eq.f32.partialorder %v543, %v595
    %vm709 = vcmp.eq.f32.partialorder %v544, %v616
    %vm710 = vcmp.eq.f32.partialorder %v545, %v637
    %vm711 = vcmp.eq.f32.partialorder %v546, %v658
    %vm712 = vcmp.eq.f32.partialorder %v547, %v595
    %vm713 = vcmp.eq.f32.partialorder %v548, %v616
    %vm714 = vcmp.eq.f32.partialorder %v549, %v637
    %vm715 = vcmp.eq.f32.partialorder %v550, %v658
    %vm716 = vcmp.eq.f32.partialorder %v551, %v595
    %vm717 = vcmp.eq.f32.partialorder %v552, %v616
    %vm718 = vcmp.eq.f32.partialorder %v553, %v637
    %vm719 = vcmp.eq.f32.partialorder %v554, %v658
    %vm720 = vcmp.eq.f32.partialorder %v555, %v595
    %vm721 = vcmp.eq.f32.partialorder %v556, %v616
    %vm722 = vcmp.eq.f32.partialorder %v557, %v637
    %vm723 = vcmp.eq.f32.partialorder %v558, %v658
    %vm724 = vcmp.eq.f32.partialorder %v559, %v595
    %vm725 = vcmp.eq.f32.partialorder %v560, %v616
    %vm726 = vcmp.eq.f32.partialorder %v561, %v637
    %vm727 = vcmp.eq.f32.partialorder %v562, %v658
    %vm728 = vcmp.eq.f32.partialorder %v563, %v595
    %vm729 = vcmp.eq.f32.partialorder %v564, %v616
    %vm730 = vcmp.eq.f32.partialorder %v565, %v637
    %vm731 = vcmp.eq.f32.partialorder %v566, %v658
    %vm732 = vcmp.eq.f32.partialorder %v567, %v595
    %vm733 = vcmp.eq.f32.partialorder %v568, %v616
    %vm734 = vcmp.eq.f32.partialorder %v569, %v637
    %vm735 = vcmp.eq.f32.partialorder %v570, %v658
    %vm736 = vcmp.eq.f32.partialorder %v571, %v595
    %vm737 = vcmp.eq.f32.partialorder %v572, %v616
    %vm738 = vcmp.eq.f32.partialorder %v573, %v637
    %vm739 = vcmp.eq.f32.partialorder %v574, %v658
    %v740 = vsel %vm676, %v660, 128
    %v741 = vsel %vm677, %v660, 128
    %v742 = vsel %vm678, %v660, 128
    %v743 = vsel %vm679, %v660, 128
    %v744 = vsel %vm680, %v661, 128
    %v745 = vsel %vm681, %v661, 128
    %v746 = vsel %vm682, %v661, 128
    %v747 = vsel %vm683, %v661, 128
    %v748 = vsel %vm684, %v662, 128
    %v749 = vsel %vm685, %v662, 128
    %v750 = vsel %vm686, %v662, 128
    %v751 = vsel %vm687, %v662, 128
    %v752 = vsel %vm688, %v663, 128
    %v753 = vsel %vm689, %v663, 128
    %v754 = vsel %vm690, %v663, 128
    %v755 = vsel %vm691, %v663, 128
    %v756 = vsel %vm692, %v664, 128
    %v757 = vsel %vm693, %v664, 128
    %v758 = vsel %vm694, %v664, 128
    %v759 = vsel %vm695, %v664, 128
    %v760 = vsel %vm696, %v665, 128
    %v761 = vsel %vm697, %v665, 128
    %v762 = vsel %vm698, %v665, 128
    %v763 = vsel %vm699, %v665, 128
    %v764 = vsel %vm700, %v666, 128
    %v765 = vsel %vm701, %v666, 128
    %v766 = vsel %vm702, %v666, 128
    %v767 = vsel %vm703, %v666, 128
    %v768 = vsel %vm704, %v667, 128
    %v769 = vsel %vm705, %v667, 128
    %v770 = vsel %vm706, %v667, 128
    %v771 = vsel %vm707, %v667, 128
    %v772 = vsel %vm708, %v668, 128
    %v773 = vsel %vm709, %v668, 128
    %v774 = vsel %vm710, %v668, 128
    %v775 = vsel %vm711, %v668, 128
    %v776 = vsel %vm712, %v669, 128
    %v777 = vsel %vm713, %v669, 128
    %v778 = vsel %vm714, %v669, 128
    %v779 = vsel %vm715, %v669, 128
    %v780 = vsel %vm716, %v670, 128
    %v781 = vsel %vm717, %v670, 128
    %v782 = vsel %vm718, %v670, 128
    %v783 = vsel %vm719, %v670, 128
    %v784 = vsel %vm720, %v671, 128
    %v785 = vsel %vm721, %v671, 128
    %v786 = vsel %vm722, %v671, 128
    %v787 = vsel %vm723, %v671, 128
    %v788 = vsel %vm724, %v672, 128
    %v789 = vsel %vm725, %v672, 128
    %v790 = vsel %vm726, %v672, 128
    %v791 = vsel %vm727, %v672, 128
    %v792 = vsel %vm728, %v673, 128
    %v793 = vsel %vm729, %v673, 128
    %v794 = vsel %vm730, %v673, 128
    %v795 = vsel %vm731, %v673, 128
    %v796 = vsel %vm732, %v674, 128
    %v797 = vsel %vm733, %v674, 128
    %v798 = vsel %vm734, %v674, 128
    %v799 = vsel %vm735, %v674, 128
    %v800 = vsel %vm736, %v675, 128
    %v801 = vsel %vm737, %v675, 128
    %v802 = vsel %vm738, %v675, 128
    %v803 = vsel %vm739, %v675, 128
    %vm804 = vcmp.lt.s32.totalorder %v740, %v744
    %v805 = vsel %vm804, %v740, %v744
    %vm806 = vcmp.lt.s32.totalorder %v805, %v748
    %v807 = vsel %vm806, %v805, %v748
    %vm808 = vcmp.lt.s32.totalorder %v807, %v752
    %v809 = vsel %vm808, %v807, %v752
    %vm810 = vcmp.lt.s32.totalorder %v809, %v756
    %v811 = vsel %vm810, %v809, %v756
    %vm812 = vcmp.lt.s32.totalorder %v811, %v760
    %v813 = vsel %vm812, %v811, %v760
    %vm814 = vcmp.lt.s32.totalorder %v813, %v764
    %v815 = vsel %vm814, %v813, %v764
    %vm816 = vcmp.lt.s32.totalorder %v815, %v768
    %v817 = vsel %vm816, %v815, %v768
    %vm818 = vcmp.lt.s32.totalorder %v817, %v772
    %v819 = vsel %vm818, %v817, %v772
    %vm820 = vcmp.lt.s32.totalorder %v819, %v776
    %v821 = vsel %vm820, %v819, %v776
    %vm822 = vcmp.lt.s32.totalorder %v821, %v780
    %v823 = vsel %vm822, %v821, %v780
    %vm824 = vcmp.lt.s32.totalorder %v823, %v784
    %v825 = vsel %vm824, %v823, %v784
    %vm826 = vcmp.lt.s32.totalorder %v825, %v788
    %v827 = vsel %vm826, %v825, %v788
    %vm828 = vcmp.lt.s32.totalorder %v827, %v792
    %v829 = vsel %vm828, %v827, %v792
    %vm830 = vcmp.lt.s32.totalorder %v829, %v796
    %v831 = vsel %vm830, %v829, %v796
    %vm832 = vcmp.lt.s32.totalorder %v831, %v800
    %v833 = vsel %vm832, %v831, %v800
    %v834 = vrot.slane %v833, 4
    %vm835 = vcmp.lt.s32.totalorder %v833, %v834
    %v836 = vsel %vm835, %v833, %v834
    %v837 = vrot.slane %v836, 2
    %vm838 = vcmp.lt.s32.totalorder %v836, %v837
    %v839 = vsel %vm838, %v836, %v837
    %v840 = vrot.slane %v839, 1
    %vm841 = vcmp.lt.s32.totalorder %v839, %v840
    %v842 = vsel %vm841, %v839, %v840
    %vm843 = vcmp.lt.s32.totalorder %v741, %v745
    %v844 = vsel %vm843, %v741, %v745
    %vm845 = vcmp.lt.s32.totalorder %v844, %v749
    %v846 = vsel %vm845, %v844, %v749
    %vm847 = vcmp.lt.s32.totalorder %v846, %v753
    %v848 = vsel %vm847, %v846, %v753
    %vm849 = vcmp.lt.s32.totalorder %v848, %v757
    %v850 = vsel %vm849, %v848, %v757
    %vm851 = vcmp.lt.s32.totalorder %v850, %v761
    %v852 = vsel %vm851, %v850, %v761
    %vm853 = vcmp.lt.s32.totalorder %v852, %v765
    %v854 = vsel %vm853, %v852, %v765
    %vm855 = vcmp.lt.s32.totalorder %v854, %v769
    %v856 = vsel %vm855, %v854, %v769
    %vm857 = vcmp.lt.s32.totalorder %v856, %v773
    %v858 = vsel %vm857, %v856, %v773
    %vm859 = vcmp.lt.s32.totalorder %v858, %v777
    %v860 = vsel %vm859, %v858, %v777
    %vm861 = vcmp.lt.s32.totalorder %v860, %v781
    %v862 = vsel %vm861, %v860, %v781
    %vm863 = vcmp.lt.s32.totalorder %v862, %v785
    %v864 = vsel %vm863, %v862, %v785
    %vm865 = vcmp.lt.s32.totalorder %v864, %v789
    %v866 = vsel %vm865, %v864, %v789
    %vm867 = vcmp.lt.s32.totalorder %v866, %v793
    %v868 = vsel %vm867, %v866, %v793
    %vm869 = vcmp.lt.s32.totalorder %v868, %v797
    %v870 = vsel %vm869, %v868, %v797
    %vm871 = vcmp.lt.s32.totalorder %v870, %v801
    %v872 = vsel %vm871, %v870, %v801
    %v873 = vrot.slane %v872, 4
    %vm874 = vcmp.lt.s32.totalorder %v872, %v873
    %v875 = vsel %vm874, %v872, %v873
    %v876 = vrot.slane %v875, 2
    %vm877 = vcmp.lt.s32.totalorder %v875, %v876
    %v878 = vsel %vm877, %v875, %v876
    %v879 = vrot.slane %v878, 1
    %vm880 = vcmp.lt.s32.totalorder %v878, %v879
    %v881 = vsel %vm880, %v878, %v879
    %vm882 = vcmp.lt.s32.totalorder %v742, %v746
    %v883 = vsel %vm882, %v742, %v746
    %vm884 = vcmp.lt.s32.totalorder %v883, %v750
    %v885 = vsel %vm884, %v883, %v750
    %vm886 = vcmp.lt.s32.totalorder %v885, %v754
    %v887 = vsel %vm886, %v885, %v754
    %vm888 = vcmp.lt.s32.totalorder %v887, %v758
    %v889 = vsel %vm888, %v887, %v758
    %vm890 = vcmp.lt.s32.totalorder %v889, %v762
    %v891 = vsel %vm890, %v889, %v762
    %vm892 = vcmp.lt.s32.totalorder %v891, %v766
    %v893 = vsel %vm892, %v891, %v766
    %vm894 = vcmp.lt.s32.totalorder %v893, %v770
    %v895 = vsel %vm894, %v893, %v770
    %vm896 = vcmp.lt.s32.totalorder %v895, %v774
    %v897 = vsel %vm896, %v895, %v774
    %vm898 = vcmp.lt.s32.totalorder %v897, %v778
    %v899 = vsel %vm898, %v897, %v778
    %vm900 = vcmp.lt.s32.totalorder %v899, %v782
    %v901 = vsel %vm900, %v899, %v782
    %vm902 = vcmp.lt.s32.totalorder %v901, %v786
    %v903 = vsel %vm902, %v901, %v786
    %vm904 = vcmp.lt.s32.totalorder %v903, %v790
    %v905 = vsel %vm904, %v903, %v790
    %vm906 = vcmp.lt.s32.totalorder %v905, %v794
    %v907 = vsel %vm906, %v905, %v794
    %vm908 = vcmp.lt.s32.totalorder %v907, %v798
    %v909 = vsel %vm908, %v907, %v798
    %vm910 = vcmp.lt.s32.totalorder %v909, %v802
    %v911 = vsel %vm910, %v909, %v802
    %v912 = vrot.slane %v911, 4
    %vm913 = vcmp.lt.s32.totalorder %v911, %v912
    %v914 = vsel %vm913, %v911, %v912
    %v915 = vrot.slane %v914, 2
    %vm916 = vcmp.lt.s32.totalorder %v914, %v915
    %v917 = vsel %vm916, %v914, %v915
    %v918 = vrot.slane %v917, 1
    %vm919 = vcmp.lt.s32.totalorder %v917, %v918
    %v920 = vsel %vm919, %v917, %v918
    %vm921 = vcmp.lt.s32.totalorder %v743, %v747
    %v922 = vsel %vm921, %v743, %v747
    %vm923 = vcmp.lt.s32.totalorder %v922, %v751
    %v924 = vsel %vm923, %v922, %v751
    %vm925 = vcmp.lt.s32.totalorder %v924, %v755
    %v926 = vsel %vm925, %v924, %v755
    %vm927 = vcmp.lt.s32.totalorder %v926, %v759
    %v928 = vsel %vm927, %v926, %v759
    %vm929 = vcmp.lt.s32.totalorder %v928, %v763
    %v930 = vsel %vm929, %v928, %v763
    %vm931 = vcmp.lt.s32.totalorder %v930, %v767
    %v932 = vsel %vm931, %v930, %v767
    %vm933 = vcmp.lt.s32.totalorder %v932, %v771
    %v934 = vsel %vm933, %v932, %v771
    %vm935 = vcmp.lt.s32.totalorder %v934, %v775
    %v936 = vsel %vm935, %v934, %v775
    %vm937 = vcmp.lt.s32.totalorder %v936, %v779
    %v938 = vsel %vm937, %v936, %v779
    %vm939 = vcmp.lt.s32.totalorder %v938, %v783
    %v940 = vsel %vm939, %v938, %v783
    %vm941 = vcmp.lt.s32.totalorder %v940, %v787
    %v942 = vsel %vm941, %v940, %v787
    %vm943 = vcmp.lt.s32.totalorder %v942, %v791
    %v944 = vsel %vm943, %v942, %v791
    %vm945 = vcmp.lt.s32.totalorder %v944, %v795
    %v946 = vsel %vm945, %v944, %v795
    %vm947 = vcmp.lt.s32.totalorder %v946, %v799
    %v948 = vsel %vm947, %v946, %v799
    %vm949 = vcmp.lt.s32.totalorder %v948, %v803
    %v950 = vsel %vm949, %v948, %v803
    %v951 = vrot.slane %v950, 4
    %vm952 = vcmp.lt.s32.totalorder %v950, %v951
    %v953 = vsel %vm952, %v950, %v951
    %v954 = vrot.slane %v953, 2
    %vm955 = vcmp.lt.s32.totalorder %v953, %v954
    %v956 = vsel %vm955, %v953, %v954
    %v957 = vrot.slane %v956, 1
    %vm958 = vcmp.lt.s32.totalorder %v956, %v957
    %v959 = vsel %vm958, %v956, %v957
    %vm960 = vcmp.eq.s32.totalorder %v660, %v842
    %vm961 = vcmp.eq.s32.totalorder %v660, %v881
    %vm962 = vcmp.eq.s32.totalorder %v660, %v920
    %vm963 = vcmp.eq.s32.totalorder %v660, %v959
    %vm964 = vcmp.eq.s32.totalorder %v661, %v842
    %vm965 = vcmp.eq.s32.totalorder %v661, %v881
    %vm966 = vcmp.eq.s32.totalorder %v661, %v920
    %vm967 = vcmp.eq.s32.totalorder %v661, %v959
    %vm968 = vcmp.eq.s32.totalorder %v662, %v842
    %vm969 = vcmp.eq.s32.totalorder %v662, %v881
    %vm970 = vcmp.eq.s32.totalorder %v662, %v920
    %vm971 = vcmp.eq.s32.totalorder %v662, %v959
    %vm972 = vcmp.eq.s32.totalorder %v663, %v842
    %vm973 = vcmp.eq.s32.totalorder %v663, %v881
    %vm974 = vcmp.eq.s32.totalorder %v663, %v920
    %vm975 = vcmp.eq.s32.totalorder %v663, %v959
    %vm976 = vcmp.eq.s32.totalorder %v664, %v842
    %vm977 = vcmp.eq.s32.totalorder %v664, %v881
    %vm978 = vcmp.eq.s32.totalorder %v664, %v920
    %vm979 = vcmp.eq.s32.totalorder %v664, %v959
    %vm980 = vcmp.eq.s32.totalorder %v665, %v842
    %vm981 = vcmp.eq.s32.totalorder %v665, %v881
    %vm982 = vcmp.eq.s32.totalorder %v665, %v920
    %vm983 = vcmp.eq.s32.totalorder %v665, %v959
    %vm984 = vcmp.eq.s32.totalorder %v666, %v842
    %vm985 = vcmp.eq.s32.totalorder %v666, %v881
    %vm986 = vcmp.eq.s32.totalorder %v666, %v920
    %vm987 = vcmp.eq.s32.totalorder %v666, %v959
    %vm988 = vcmp.eq.s32.totalorder %v667, %v842
    %vm989 = vcmp.eq.s32.totalorder %v667, %v881
    %vm990 = vcmp.eq.s32.totalorder %v667, %v920
    %vm991 = vcmp.eq.s32.totalorder %v667, %v959
    %vm992 = vcmp.eq.s32.totalorder %v668, %v842
    %vm993 = vcmp.eq.s32.totalorder %v668, %v881
    %vm994 = vcmp.eq.s32.totalorder %v668, %v920
    %vm995 = vcmp.eq.s32.totalorder %v668, %v959
    %vm996 = vcmp.eq.s32.totalorder %v669, %v842
    %vm997 = vcmp.eq.s32.totalorder %v669, %v881
    %vm998 = vcmp.eq.s32.totalorder %v669, %v920
    %vm999 = vcmp.eq.s32.totalorder %v669, %v959
    %vm1000 = vcmp.eq.s32.totalorder %v670, %v842
    %vm1001 = vcmp.eq.s32.totalorder %v670, %v881
    %vm1002 = vcmp.eq.s32.totalorder %v670, %v920
    %vm1003 = vcmp.eq.s32.totalorder %v670, %v959
    %vm1004 = vcmp.eq.s32.totalorder %v671, %v842
    %vm1005 = vcmp.eq.s32.totalorder %v671, %v881
    %vm1006 = vcmp.eq.s32.totalorder %v671, %v920
    %vm1007 = vcmp.eq.s32.totalorder %v671, %v959
    %vm1008 = vcmp.eq.s32.totalorder %v672, %v842
    %vm1009 = vcmp.eq.s32.totalorder %v672, %v881
    %vm1010 = vcmp.eq.s32.totalorder %v672, %v920
    %vm1011 = vcmp.eq.s32.totalorder %v672, %v959
    %vm1012 = vcmp.eq.s32.totalorder %v673, %v842
    %vm1013 = vcmp.eq.s32.totalorder %v673, %v881
    %vm1014 = vcmp.eq.s32.totalorder %v673, %v920
    %vm1015 = vcmp.eq.s32.totalorder %v673, %v959
    %vm1016 = vcmp.eq.s32.totalorder %v674, %v842
    %vm1017 = vcmp.eq.s32.totalorder %v674, %v881
    %vm1018 = vcmp.eq.s32.totalorder %v674, %v920
    %vm1019 = vcmp.eq.s32.totalorder %v674, %v959
    %vm1020 = vcmp.eq.s32.totalorder %v675, %v842
    %vm1021 = vcmp.eq.s32.totalorder %v675, %v881
    %vm1022 = vcmp.eq.s32.totalorder %v675, %v920
    %vm1023 = vcmp.eq.s32.totalorder %v675, %v959
    %v1024 = vsel %vm960, 1, 0
    %v1025 = vsel %vm961, 1, 0
    %v1026 = vsel %vm962, 1, 0
    %v1027 = vsel %vm963, 1, 0
    %v1028 = vsel %vm964, 1, 0
    %v1029 = vsel %vm965, 1, 0
    %v1030 = vsel %vm966, 1, 0
    %v1031 = vsel %vm967, 1, 0
    %v1032 = vsel %vm968, 1, 0
    %v1033 = vsel %vm969, 1, 0
    %v1034 = vsel %vm970, 1, 0
    %v1035 = vsel %vm971, 1, 0
    %v1036 = vsel %vm972, 1, 0
    %v1037 = vsel %vm973, 1, 0
    %v1038 = vsel %vm974, 1, 0
    %v1039 = vsel %vm975, 1, 0
    %v1040 = vsel %vm976, 1, 0
    %v1041 = vsel %vm977, 1, 0
    %v1042 = vsel %vm978, 1, 0
    %v1043 = vsel %vm979, 1, 0
    %v1044 = vsel %vm980, 1, 0
    %v1045 = vsel %vm981, 1, 0
    %v1046 = vsel %vm982, 1, 0
    %v1047 = vsel %vm983, 1, 0
    %v1048 = vsel %vm984, 1, 0
    %v1049 = vsel %vm985, 1, 0
    %v1050 = vsel %vm986, 1, 0
    %v1051 = vsel %vm987, 1, 0
    %v1052 = vsel %vm988, 1, 0
    %v1053 = vsel %vm989, 1, 0
    %v1054 = vsel %vm990, 1, 0
    %v1055 = vsel %vm991, 1, 0
    %v1056 = vsel %vm992, 1, 0
    %v1057 = vsel %vm993, 1, 0
    %v1058 = vsel %vm994, 1, 0
    %v1059 = vsel %vm995, 1, 0
    %v1060 = vsel %vm996, 1, 0
    %v1061 = vsel %vm997, 1, 0
    %v1062 = vsel %vm998, 1, 0
    %v1063 = vsel %vm999, 1, 0
    %v1064 = vsel %vm1000, 1, 0
    %v1065 = vsel %vm1001, 1, 0
    %v1066 = vsel %vm1002, 1, 0
    %v1067 = vsel %vm1003, 1, 0
    %v1068 = vsel %vm1004, 1, 0
    %v1069 = vsel %vm1005, 1, 0
    %v1070 = vsel %vm1006, 1, 0
    %v1071 = vsel %vm1007, 1, 0
    %v1072 = vsel %vm1008, 1, 0
    %v1073 = vsel %vm1009, 1, 0
    %v1074 = vsel %vm1010, 1, 0
    %v1075 = vsel %vm1011, 1, 0
    %v1076 = vsel %vm1012, 1, 0
    %v1077 = vsel %vm1013, 1, 0
    %v1078 = vsel %vm1014, 1, 0
    %v1079 = vsel %vm1015, 1, 0
    %v1080 = vsel %vm1016, 1, 0
    %v1081 = vsel %vm1017, 1, 0
    %v1082 = vsel %vm1018, 1, 0
    %v1083 = vsel %vm1019, 1, 0
    %v1084 = vsel %vm1020, 1, 0
    %v1085 = vsel %vm1021, 1, 0
    %v1086 = vsel %vm1022, 1, 0
    %v1087 = vsel %vm1023, 1, 0
    %v1088 = vcvt.s32.f32 %v1024
    %v1089 = vcvt.s32.f32 %v1025
    %v1090 = vcvt.s32.f32 %v1026
    %v1091 = vcvt.s32.f32 %v1027
    %v1092 = vcvt.s32.f32 %v1028
    %v1093 = vcvt.s32.f32 %v1029
    %v1094 = vcvt.s32.f32 %v1030
    %v1095 = vcvt.s32.f32 %v1031
    %v1096 = vcvt.s32.f32 %v1032
    %v1097 = vcvt.s32.f32 %v1033
    %v1098 = vcvt.s32.f32 %v1034
    %v1099 = vcvt.s32.f32 %v1035
    %v1100 = vcvt.s32.f32 %v1036
    %v1101 = vcvt.s32.f32 %v1037
    %v1102 = vcvt.s32.f32 %v1038
    %v1103 = vcvt.s32.f32 %v1039
    %v1104 = vcvt.s32.f32 %v1040
    %v1105 = vcvt.s32.f32 %v1041
    %v1106 = vcvt.s32.f32 %v1042
    %v1107 = vcvt.s32.f32 %v1043
    %v1108 = vcvt.s32.f32 %v1044
    %v1109 = vcvt.s32.f32 %v1045
    %v1110 = vcvt.s32.f32 %v1046
    %v1111 = vcvt.s32.f32 %v1047
    %v1112 = vcvt.s32.f32 %v1048
    %v1113 = vcvt.s32.f32 %v1049
    %v1114 = vcvt.s32.f32 %v1050
    %v1115 = vcvt.s32.f32 %v1051
    %v1116 = vcvt.s32.f32 %v1052
    %v1117 = vcvt.s32.f32 %v1053
    %v1118 = vcvt.s32.f32 %v1054
    %v1119 = vcvt.s32.f32 %v1055
    %v1120 = vcvt.s32.f32 %v1056
    %v1121 = vcvt.s32.f32 %v1057
    %v1122 = vcvt.s32.f32 %v1058
    %v1123 = vcvt.s32.f32 %v1059
    %v1124 = vcvt.s32.f32 %v1060
    %v1125 = vcvt.s32.f32 %v1061
    %v1126 = vcvt.s32.f32 %v1062
    %v1127 = vcvt.s32.f32 %v1063
    %v1128 = vcvt.s32.f32 %v1064
    %v1129 = vcvt.s32.f32 %v1065
    %v1130 = vcvt.s32.f32 %v1066
    %v1131 = vcvt.s32.f32 %v1067
    %v1132 = vcvt.s32.f32 %v1068
    %v1133 = vcvt.s32.f32 %v1069
    %v1134 = vcvt.s32.f32 %v1070
    %v1135 = vcvt.s32.f32 %v1071
    %v1136 = vcvt.s32.f32 %v1072
    %v1137 = vcvt.s32.f32 %v1073
    %v1138 = vcvt.s32.f32 %v1074
    %v1139 = vcvt.s32.f32 %v1075
    %v1140 = vcvt.s32.f32 %v1076
    %v1141 = vcvt.s32.f32 %v1077
    %v1142 = vcvt.s32.f32 %v1078
    %v1143 = vcvt.s32.f32 %v1079
    %v1144 = vcvt.s32.f32 %v1080
    %v1145 = vcvt.s32.f32 %v1081
    %v1146 = vcvt.s32.f32 %v1082
    %v1147 = vcvt.s32.f32 %v1083
    %v1148 = vcvt.s32.f32 %v1084
    %v1149 = vcvt.s32.f32 %v1085
    %v1150 = vcvt.s32.f32 %v1086
    %v1151 = vcvt.s32.f32 %v1087
    %1152 = vmatpush.msra.mxu0 %v1148
    %1153 = vmatpush.msra.mxu0 %v1144
    %1154 = vmatpush.msra.mxu0 %v1140
    %1155 = vmatpush.msra.mxu0 %v1136
    %1156 = vmatpush.msra.mxu0 %v1132
    %1157 = vmatpush.msra.mxu0 %v1128
    %1158 = vmatpush.msra.mxu0 %v1124
    %1159 = vmatpush.msra.mxu0 %v1120
    %1160 = vmatpush.msra.mxu0 %v1116
    %1161 = vmatpush.msra.mxu0 %v1112
    %1162 = vmatpush.msra.mxu0 %v1108
    %1163 = vmatpush.msra.mxu0 %v1104
    %1164 = vmatpush.msra.mxu0 %v1100
    %1165 = vmatpush.msra.mxu0 %v1096
    %1166 = vmatpush.msra.mxu0 %v1092
    %1167 = vmatpush.msra.mxu0 %v1088
    %1168 = vmatmul.f32.gmra.mxu0 %v41
    %v1169 = vpop.f32.mrf.mxu0
    %v1170 = vadd.f32 0.0, %v1169
    %1171 = vdwg.mxu0
    %1172 = vmatpush.msra.mxu0 %v1149
    %1173 = vmatpush.msra.mxu0 %v1145
    %1174 = vmatpush.msra.mxu0 %v1141
    %1175 = vmatpush.msra.mxu0 %v1137
    %1176 = vmatpush.msra.mxu0 %v1133
    %1177 = vmatpush.msra.mxu0 %v1129
    %1178 = vmatpush.msra.mxu0 %v1125
    %1179 = vmatpush.msra.mxu0 %v1121
    %1180 = vmatpush.msra.mxu0 %v1117
    %1181 = vmatpush.msra.mxu0 %v1113
    %1182 = vmatpush.msra.mxu0 %v1109
    %1183 = vmatpush.msra.mxu0 %v1105
    %1184 = vmatpush.msra.mxu0 %v1101
    %1185 = vmatpush.msra.mxu0 %v1097
    %1186 = vmatpush.msra.mxu0 %v1093
    %1187 = vmatpush.msra.mxu0 %v1089
    %1188 = vmatmul.f32.gmra.mxu0 %v41
    %v1189 = vpop.f32.mrf.mxu0
    %v1190 = vadd.f32 0.0, %v1189
    %1191 = vdwg.mxu0
    %1192 = vmatpush.msra.mxu0 %v1150
    %1193 = vmatpush.msra.mxu0 %v1146
    %1194 = vmatpush.msra.mxu0 %v1142
    %1195 = vmatpush.msra.mxu0 %v1138
    %1196 = vmatpush.msra.mxu0 %v1134
    %1197 = vmatpush.msra.mxu0 %v1130
    %1198 = vmatpush.msra.mxu0 %v1126
    %1199 = vmatpush.msra.mxu0 %v1122
    %1200 = vmatpush.msra.mxu0 %v1118
    %1201 = vmatpush.msra.mxu0 %v1114
    %1202 = vmatpush.msra.mxu0 %v1110
    %1203 = vmatpush.msra.mxu0 %v1106
    %1204 = vmatpush.msra.mxu0 %v1102
    %1205 = vmatpush.msra.mxu0 %v1098
    %1206 = vmatpush.msra.mxu0 %v1094
    %1207 = vmatpush.msra.mxu0 %v1090
    %1208 = vmatmul.f32.gmra.mxu0 %v41
    %v1209 = vpop.f32.mrf.mxu0
    %v1210 = vadd.f32 0.0, %v1209
    %1211 = vdwg.mxu0
    %1212 = vmatpush.msra.mxu0 %v1151
    %1213 = vmatpush.msra.mxu0 %v1147
    %1214 = vmatpush.msra.mxu0 %v1143
    %1215 = vmatpush.msra.mxu0 %v1139
    %1216 = vmatpush.msra.mxu0 %v1135
    %1217 = vmatpush.msra.mxu0 %v1131
    %1218 = vmatpush.msra.mxu0 %v1127
    %1219 = vmatpush.msra.mxu0 %v1123
    %1220 = vmatpush.msra.mxu0 %v1119
    %1221 = vmatpush.msra.mxu0 %v1115
    %1222 = vmatpush.msra.mxu0 %v1111
    %1223 = vmatpush.msra.mxu0 %v1107
    %1224 = vmatpush.msra.mxu0 %v1103
    %1225 = vmatpush.msra.mxu0 %v1099
    %1226 = vmatpush.msra.mxu0 %v1095
    %1227 = vmatpush.msra.mxu0 %v1091
    %1228 = vmatmul.f32.gmra.mxu0 %v41
    %v1229 = vpop.f32.mrf.mxu0
    %v1230 = vadd.f32 0.0, %v1229
    %1231 = vdwg.mxu0
    %1232 = vst [vmem:[#allocation2] sm:$0xff] %v1170
    %1233 = vst [vmem:[#allocation2 + $0x8] sm:$0xff] %v1190
    %1234 = vst [vmem:[#allocation2 + $0x10] sm:$0xff] %v1210
    %1235 = vst [vmem:[#allocation2 + $0x18] sm:$0xff] %v1230
    %v1236 = vsub.f32 %v1170, %v21
    %v1237 = vsub.f32 %v1190, %v22
    %v1238 = vsub.f32 %v1210, %v23
    %v1239 = vsub.f32 %v1230, %v24
    %v1240 = vmul.f32 %v1236, %v1236
    %v1241 = vmul.f32 %v1237, %v1237
    %v1242 = vmul.f32 %v1238, %v1238
    %v1243 = vmul.f32 %v1239, %v1239
    %v1244 = vrot.slane %v1240, 4
    %v1245 = vadd.f32 %v1240, %v1244
    %v1246 = vrot.slane %v1245, 2
    %v1247 = vadd.f32 %v1245, %v1246
    %v1248 = vrot.slane %v1247, 1
    %v1249 = vadd.f32 %v1247, %v1248
    %v1250 = vrot.slane %v1241, 4
    %v1251 = vadd.f32 %v1241, %v1250
    %v1252 = vrot.slane %v1251, 2
    %v1253 = vadd.f32 %v1251, %v1252
    %v1254 = vrot.slane %v1253, 1
    %v1255 = vadd.f32 %v1253, %v1254
    %v1256 = vrot.slane %v1242, 4
    %v1257 = vadd.f32 %v1242, %v1256
    %v1258 = vrot.slane %v1257, 2
    %v1259 = vadd.f32 %v1257, %v1258
    %v1260 = vrot.slane %v1259, 1
    %v1261 = vadd.f32 %v1259, %v1260
    %v1262 = vrot.slane %v1243, 4
    %v1263 = vadd.f32 %v1243, %v1262
    %v1264 = vrot.slane %v1263, 2
    %v1265 = vadd.f32 %v1263, %v1264
    %v1266 = vrot.slane %v1265, 1
    %v1267 = vadd.f32 %v1265, %v1266
    %v1272 = vrot.slane %v1255, 7
    %v1273 = vrot.slane %v1261, 6
    %v1274 = vrot.slane %v1267, 5
    %vm1275 = vcmask 1040384
    %v1276 = vsel %vm1275, %v1249, %v1272
    %vm1277 = vcmask 1042434
    %v1278 = vsel %vm1277, %v1273, %v1274
    %vm1279 = vcmask 1041408
    %v1280 = vsel %vm1279, %v1276, %v1278
    %v1282 = vlaneseq
    %vm1283 = vcmp.ge.s32.totalorder %v1282, 0
    %vm1284 = vcmp.lt.s32.totalorder %v1282, 512
    %vm1285 = vmand %vm1283, %vm1284
    %1286 = vst.msk [vmem:[#allocation4] sm:$0xf] %vm1285, %v1280
    // Predicated region
    $region18: #{tpu_custom_call.1} parent=1 // pred_check
      _
    $region19: #{tpu_custom_call.1} parent=1 // pred_check_branch
      %1288 = sbr.rel (0) target = $region21
    $region20: #{tpu_custom_call.1} parent=1 // pred_region
      %1290 = vsyncadd [#allocation3], 0
      %s1292 = sshll.u32 [#allocation2], 4
      %s1293 = int_to_ptr.vmem [resolvable:$true] %s1292
      %s1294 = sshll.u32 %s4, 4
      %s1295 = int_to_ptr.hbm [resolvable:$true] %s1294
      %1297 = dma.vmem_to_hbm [thread:$0]  %s1293, 512, %s1295, [#allocation3]
    $region21: #{tpu_custom_call.1} parent=1 // pred_fallthru
      _
    // Predicated region
    $region22: #{tpu_custom_call.1} parent=1 // pred_check
      _
    $region23: #{tpu_custom_call.1} parent=1 // pred_check_branch
      %1299 = sbr.rel (0) target = $region25
    $region24: #{tpu_custom_call.1} parent=1 // pred_region
      %1301 = vsyncadd [#allocation5], 0
      %s1303 = sshll.u32 [#allocation4], 4
      %s1304 = int_to_ptr.vmem [resolvable:$true] %s1303
      %s1305 = sshll.u32 %s5, 4
      %s1306 = int_to_ptr.hbm [resolvable:$true] %s1305
      %1308 = dma.vmem_to_hbm [thread:$0]  %s1304, 64, %s1306, [#allocation5]
    $region25: #{tpu_custom_call.1} parent=1 // pred_fallthru
      _
    // Predicated region
    $region26: #{tpu_custom_call.1} parent=1 // pred_check
      _
    $region27: #{tpu_custom_call.1} parent=1 // pred_check_branch
      %1310 = sbr.rel (0) target = $region29
    $region28: #{tpu_custom_call.1} parent=1 // pred_region
      %1312 = dma.done [#allocation3], 512
    $region29: #{tpu_custom_call.1} parent=1 // pred_fallthru
      _
    // Predicated region
    $region30: #{tpu_custom_call.1} parent=1 // pred_check
      _
    $region31: #{tpu_custom_call.1} parent=1 // pred_check_branch
      %1314 = sbr.rel (0) target = $region33
    $region32: #{tpu_custom_call.1} parent=1 // pred_region
      %1316 = dma.done [#allocation5], 64
    $region33: #{tpu_custom_call.1} parent=1 // pred_fallthru
      _
    %1317 = vsyncpa [#allocation3], 1
    %1318 = vsyncpa [#allocation5], 1

</llo_original>
